<compile_context>
chip_gen: v5e
topology: v5e:2x2
jax: 0.10.0
libtpu: 0.0.40
codegen_flags: <defaults>
</compile_context>

<pallas_src>
import math

import jax
import jax.numpy as jnp
from jax.experimental import pallas as pl
from jax.experimental.pallas import tpu as pltpu

_TILE_N_MAX = 1024
_TILE_K_MAX = 1024
_LANES = 128
_SUBLANES = 8


def _round_up(x, m):
    return ((x + m - 1) // m) * m


def _pick_tile(size, align, cap):
    """Largest multiple of `align` that is <= cap and divides round_up(size, align)."""
    size_al = _round_up(max(size, 1), align)
    t = max(align, (min(cap, size_al) // align) * align)
    while size_al % t:
        t -= align
    return t, size_al


def _vmem_limit_bytes(tile_n, tile_k, d_pad, c_pad, x_itemsize):
    x_bytes = 2 * tile_n * tile_k * x_itemsize        # double-buffered z tiles
    ab_bytes = 2 * 2 * d_pad * c_pad * 2              # A + B (bf16), 2 buffers each
    const_bytes = 2 * c_pad * 4
    out_bytes = 2 * tile_n * c_pad * 4
    need = x_bytes + ab_bytes + const_bytes + out_bytes
    # Generous headroom, floor at the common scoped default, cap at v7x physical.
    return int(min(64 << 20, max(2 * need + (8 << 20), 32 << 20)))


# ---------------------------------------------------------------------------
# Kernel
# ---------------------------------------------------------------------------
def _log_probs_kernel(x_ref, a_ref, b_ref, const_ref, o_ref):
    """Per-class diagonal-Gaussian log-probs, K-tiled over the feature dim.

    x_ref     : [TILE_N, TILE_K]  tile of the flattened input (f32 or bf16)
    a_ref     : [D_PAD, C_PAD]    (mean * inv_var).T, bf16, VMEM-resident
    b_ref     : [D_PAD, C_PAD]    (-0.5 * inv_var).T, bf16, VMEM-resident
    const_ref : [1, C_PAD]        per-class constant term, f32
    o_ref     : [TILE_N, C_PAD]   f32 output block, resident across the K axis
                                  (doubles as the accumulator)
    """
    k = pl.program_id(1)
    tile_k = x_ref.shape[1]

    @pl.when(k == 0)
    def _init():
        # Fold the constant term into the accumulator init.
        o_ref[...] = jnp.broadcast_to(const_ref[...], o_ref.shape)

    # Aligned in-VMEM slice of the resident A/B matrices for this K tile.
    ks = pl.multiple_of(k * tile_k, tile_k)
    a = a_ref[pl.ds(ks, tile_k), :]
    b = b_ref[pl.ds(ks, tile_k), :]

    x = x_ref[...]
    x32 = x.astype(jnp.float32)           # square in f32 (no bf16 VALU on v5e)
    xb = x32.astype(jnp.bfloat16)         # bf16 MXU operands
    x2b = (x32 * x32).astype(jnp.bfloat16)

    o_ref[...] += (
        jnp.dot(xb, a, preferred_element_type=jnp.float32)
        + jnp.dot(x2b, b, preferred_element_type=jnp.float32)
    )


# ---------------------------------------------------------------------------
# Parameter prep (done ONCE, outside the per-step forward)
# ---------------------------------------------------------------------------
def make_per_class_gaussian_params(class_means, class_log_stds):
    """Precompute A, B (bf16, -0.5 folded into B) and const, padded lane-dense."""
    n_classes, d = class_means.shape
    c_pad = _round_up(max(n_classes, 1), _LANES)
    d_pad = _round_up(d, _LANES)

    means = class_means.astype(jnp.float32)
    log_stds = class_log_stds.astype(jnp.float32)
    inv_var = jnp.exp(-2.0 * log_stds)                               # [C, D]

    a = (means * inv_var).T                                          # [D, C]
    b = (-0.5 * inv_var).T                                           # [D, C]
    const = jnp.sum(
        -0.5 * math.log(2.0 * math.pi)
        - log_stds
        - 0.5 * means * means * inv_var,
        axis=1,
    )                                                                # [C]

    a_p = jnp.zeros((d_pad, c_pad), jnp.float32).at[:d, :n_classes].set(a)
    b_p = jnp.zeros((d_pad, c_pad), jnp.float32).at[:d, :n_classes].set(b)
    const_p = jnp.zeros((1, c_pad), jnp.float32).at[0, :n_classes].set(const)

    return dict(a=a_p.astype(jnp.bfloat16), b=b_p.astype(jnp.bfloat16),
                const=const_p,
                n_classes=n_classes, d=d, d_pad=d_pad, c_pad=c_pad)


# ---------------------------------------------------------------------------
# Wrapper
# ---------------------------------------------------------------------------
def log_probs_per_class(z_flat, params, *,
                        tile_n_max=_TILE_N_MAX, tile_k_max=_TILE_K_MAX):
    """z_flat: [N, D] -> [N, n_classes] per-class log probs."""
    n, d = z_flat.shape
    assert d == params["d"], (d, params["d"])

    a, b, const = params["a"], params["b"], params["const"]
    d_pad, c_pad = params["d_pad"], params["c_pad"]

    tile_k, _ = _pick_tile(d, _LANES, tile_k_max)
    tile_n, n_pad = _pick_tile(n, _SUBLANES, tile_n_max)
    # Prefer >= 2 batch tiles so both v7x TensorCores get work (megacore).
    if n_pad // tile_n == 1 and n_pad >= 2 * _SUBLANES:
        tile_n, n_pad = _pick_tile(n, _SUBLANES, n_pad // 2)

    x = z_flat
    if (n_pad, d_pad) != (n, d):
        # Only materialize a padded copy when genuinely unaligned (<8 rows /
        # <128 cols of padding); aligned inputs stream straight from HBM.
        x = jnp.pad(x, ((0, n_pad - n), (0, d_pad - d)))

    grid = (n_pad // tile_n, d_pad // tile_k)
    x_itemsize = x.dtype.itemsize

    out = pl.pallas_call(
        _log_probs_kernel,
        out_shape=jax.ShapeDtypeStruct((n_pad, c_pad), jnp.float32),
        grid_spec=pltpu.PrefetchScalarGridSpec(
            num_scalar_prefetch=0,
            grid=grid,
            in_specs=[
                # z tile: streamed / double-buffered.
                pl.BlockSpec((tile_n, tile_k), lambda i, k: (i, k)),
                # A/B/const: constant block index -> DMA'd once, VMEM-resident.
                pl.BlockSpec((d_pad, c_pad), lambda i, k: (0, 0)),
                pl.BlockSpec((d_pad, c_pad), lambda i, k: (0, 0)),
                pl.BlockSpec((1, c_pad), lambda i, k: (0, 0)),
            ],
            out_specs=pl.BlockSpec((tile_n, c_pad), lambda i, k: (i, 0)),
        ),
        compiler_params=pltpu.CompilerParams(
            dimension_semantics=("parallel", "arbitrary"),
            vmem_limit_bytes=_vmem_limit_bytes(tile_n, tile_k, d_pad, c_pad,
                                               x_itemsize),
        ),
        cost_estimate=pl.CostEstimate(
            flops=4 * n_pad * d_pad * c_pad + n_pad * d_pad,
            transcendentals=0,
            bytes_accessed=(n_pad * d_pad * x_itemsize
                            + 2 * d_pad * c_pad * 2
                            + c_pad * 4
                            + n_pad * c_pad * 4),
        ),
    )(x, a, b, const)

    # Slice padded rows / padded (lane-dense) class columns off outside.
    return out[:n, :params["n_classes"]]


def per_class_dists_forward(z, params, fixed=None):
    """Mirrors PerClassDists.forward: returns (z, lps[N, n_classes]).

    `fixed` is accepted for signature parity with the PyTorch module; the
    per-class Gaussian log-prob does not depend on it.
    """
    # TODO(synk): PerClassDists.invert (multinomial class sampling + per-class
    # inverse scatter) is host/control-flow heavy and not translated here.
    n = z.shape[0]
    z_flat = z.reshape(n, -1)
    lps = log_probs_per_class(z_flat, params)
    return z, lps


# ---------------------------------------------------------------------------
# Pure-JAX reference for verification
# ---------------------------------------------------------------------------
def _reference_log_probs(z_flat, means, log_stds):
    stds = jnp.exp(log_stds)
    diff = z_flat[:, None, :] - means[None, :, :]                    # [N, C, D]
    per_dim = (-0.5 * math.log(2.0 * math.pi)
               - log_stds[None, :, :]
               - 0.5 * (diff / stds[None, :, :]) ** 2)
    return jnp.sum(per_dim, axis=-1)                                 # [N, C]


# ---------------------------------------------------------------------------
# Main
# ---------------------------------------------------------------------------
if __name__ == "__main__":
    key = jax.random.PRNGKey(0)
    k_x, k_m, k_s, k_x2 = jax.random.split(key, 4)

    # --- primary test: module-consistent small shapes (NCHW like PyTorch) ---
    N, C_in, H, W = 2, 4, 16, 16
    n_classes = 10
    D = C_in * H * W

    z = jax.random.normal(k_x, (N, C_in, H, W), dtype=jnp.float32)
    class_means = 0.1 * jax.random.normal(k_m, (n_classes, D), dtype=jnp.float32)
    class_log_stds = 0.05 * jax.random.normal(k_s, (n_classes, D), dtype=jnp.float32)

    # Parameters derived ONCE (exp / transpose / bf16 cast / padding not per step).
    params = make_per_class_gaussian_params(class_means, class_log_stds)
    jax.block_until_ready(params["a"])

    z_out, lps = per_class_dists_forward(z, params, fixed=None)
    jax.block_until_ready(lps)

    z_flat = z.reshape(N, -1)
    ref = _reference_log_probs(z_flat, class_means, class_log_stds)

    assert lps.shape == (N, n_classes), lps.shape
    assert jnp.allclose(lps, ref, rtol=2e-3, atol=0.5), (
        float(jnp.max(jnp.abs(lps - ref))))
    assert jnp.array_equal(z_out, z)

    # --- secondary test: multi-tile grid (k>0 accumulate + multi batch tiles) ---
    N2 = 24
    z2 = jax.random.normal(k_x2, (N2, D), dtype=jnp.float32)
    lps2 = log_probs_per_class(z2, params, tile_n_max=8, tile_k_max=256)
    jax.block_until_ready(lps2)
    ref2 = _reference_log_probs(z2, class_means, class_log_stds)
    assert lps2.shape == (N2, n_classes), lps2.shape
    assert jnp.allclose(lps2, ref2, rtol=2e-3, atol=0.5), (
        float(jnp.max(jnp.abs(lps2 - ref2))))

    print("KERNEL_OK")
</pallas_src>

<mosaic_0001>
module attributes {stable_mosaic.version = 11 : i64} {
  func.func @_log_probs_kernel(%arg0: i32, %arg1: i32, %arg2: memref<8x1024xf32, #tpu.memory_space<vmem>>, %arg3: memref<1024x128xbf16, #tpu.memory_space<vmem>>, %arg4: memref<1024x128xbf16, #tpu.memory_space<vmem>>, %arg5: memref<1x128xf32, #tpu.memory_space<vmem>>, %arg6: memref<8x128xf32, #tpu.memory_space<vmem>>) attributes {dimension_semantics = [#tpu.dimension_semantics<parallel>, #tpu.dimension_semantics<arbitrary>], iteration_bounds = array<i64: 1, 1>, scalar_prefetch = 0 : i64, scratch_operands = 0 : i64, tpu.core_type = #tpu.core_type<tc>, window_params = [{transform_indices = @transform_0, window_bounds = array<i64: 8, 1024>}, {pipeline_mode = #tpu.pipeline_mode<synchronous>, transform_indices = @transform_1, window_bounds = array<i64: 1024, 128>}, {pipeline_mode = #tpu.pipeline_mode<synchronous>, transform_indices = @transform_2, window_bounds = array<i64: 1024, 128>}, {pipeline_mode = #tpu.pipeline_mode<synchronous>, transform_indices = @transform_3, window_bounds = array<i64: 1, 128>}, {transform_indices = @transform_4, window_bounds = array<i64: 8, 128>}]} {
    %c0_i32 = arith.constant 0 : i32
    %0 = arith.cmpi eq, %arg1, %c0_i32 : i32
    %1 = arith.extui %0 : i1 to i32
    %c0_i32_0 = arith.constant 0 : i32
    %2 = arith.cmpi ne, %1, %c0_i32_0 : i32
    scf.if %2 {
      %c0_9 = arith.constant 0 : index
      %c0_10 = arith.constant 0 : index
      %19 = vector.load %arg5[%c0_9, %c0_10] : memref<1x128xf32, #tpu.memory_space<vmem>>, vector<1x128xf32>
      %20 = vector.shape_cast %19 : vector<1x128xf32> to vector<1x128xf32>
      %21 = vector.broadcast %20 : vector<1x128xf32> to vector<8x128xf32>
      %c0_11 = arith.constant 0 : index
      %c0_12 = arith.constant 0 : index
      %22 = vector.load %arg6[%c0_11, %c0_12] : memref<8x128xf32, #tpu.memory_space<vmem>>, vector<8x128xf32>
      tpu.vector_store %arg6[%c0_11, %c0_12], %21 {strides = array<i32>} : memref<8x128xf32, #tpu.memory_space<vmem>>, vector<8x128xf32>,
    } else {
    }
    %c1024_i32 = arith.constant 1024 : i32
    %3 = arith.muli %arg1, %c1024_i32 : i32
    %4 = tpu.assume_multiple %3, 1024 : i32
    %5 = arith.index_cast %4 : i32 to index
    %c0 = arith.constant 0 : index
    %6 = vector.load %arg3[%5, %c0] : memref<1024x128xbf16, #tpu.memory_space<vmem>>, vector<1024x128xbf16>
    %7 = arith.index_cast %4 : i32 to index
    %c0_1 = arith.constant 0 : index
    %8 = vector.load %arg4[%7, %c0_1] : memref<1024x128xbf16, #tpu.memory_space<vmem>>, vector<1024x128xbf16>
    %c0_2 = arith.constant 0 : index
    %c0_3 = arith.constant 0 : index
    %9 = vector.load %arg2[%c0_2, %c0_3] : memref<8x1024xf32, #tpu.memory_space<vmem>>, vector<8x1024xf32>
    %10 = arith.truncf %9 : vector<8x1024xf32> to vector<8x1024xbf16>
    %11 = arith.mulf %9, %9 : vector<8x1024xf32>
    %12 = arith.truncf %11 : vector<8x1024xf32> to vector<8x1024xbf16>
    %c0_4 = arith.constant 0 : index
    %c0_5 = arith.constant 0 : index
    %13 = vector.load %arg6[%c0_4, %c0_5] : memref<8x128xf32, #tpu.memory_space<vmem>>, vector<8x128xf32>
    %cst = arith.constant dense<0.000000e+00> : vector<8x128xf32>
    %14 = tpu.matmul %10, %6, %cst {dimension_numbers = #tpu.dot_dimension_numbers<[1], [0], [0], [1], [0, 0, 1, 1], [], []>} : vector<8x1024xbf16>, vector<1024x128xbf16>, vector<8x128xf32> -> vector<8x128xf32>
    %cst_6 = arith.constant dense<0.000000e+00> : vector<8x128xf32>
    %15 = tpu.matmul %12, %8, %cst_6 {dimension_numbers = #tpu.dot_dimension_numbers<[1], [0], [0], [1], [0, 0, 1, 1], [], []>} : vector<8x1024xbf16>, vector<1024x128xbf16>, vector<8x128xf32> -> vector<8x128xf32>
    %16 = arith.addf %14, %15 : vector<8x128xf32>
    %17 = arith.addf %13, %16 : vector<8x128xf32>
    %c0_7 = arith.constant 0 : index
    %c0_8 = arith.constant 0 : index
    %18 = vector.load %arg6[%c0_7, %c0_8] : memref<8x128xf32, #tpu.memory_space<vmem>>, vector<8x128xf32>
    tpu.vector_store %arg6[%c0_7, %c0_8], %17 {strides = array<i32>} : memref<8x128xf32, #tpu.memory_space<vmem>>, vector<8x128xf32>,
    return
  }
  func.func @transform_0(%arg0: i32, %arg1: i32) -> (i32, i32) {
    %c0_i32 = arith.constant 0 : i32
    return %arg0, %arg1 : i32, i32
  }
  func.func @transform_1(%arg0: i32, %arg1: i32) -> (i32, i32) {
    %c0_i32 = arith.constant 0 : i32
    %c0_i32_0 = arith.constant 0 : i32
    %c0_i32_1 = arith.constant 0 : i32
    return %c0_i32, %c0_i32_0 : i32, i32
  }
  func.func @transform_2(%arg0: i32, %arg1: i32) -> (i32, i32) {
    %c0_i32 = arith.constant 0 : i32
    %c0_i32_0 = arith.constant 0 : i32
    %c0_i32_1 = arith.constant 0 : i32
    return %c0_i32, %c0_i32_0 : i32, i32
  }
  func.func @transform_3(%arg0: i32, %arg1: i32) -> (i32, i32) {
    %c0_i32 = arith.constant 0 : i32
    %c0_i32_0 = arith.constant 0 : i32
    %c0_i32_1 = arith.constant 0 : i32
    return %c0_i32, %c0_i32_0 : i32, i32
  }
  func.func @transform_4(%arg0: i32, %arg1: i32) -> (i32, i32) {
    %c0_i32 = arith.constant 0 : i32
    %c0_i32_0 = arith.constant 0 : i32
    return %arg0, %c0_i32 : i32, i32
  }
}

</mosaic_0001>

<llo_original>
// kernel: tpu_custom_call.1
$region0: #{tpu_custom_call.1}
  #allocation0 [shape = 'u32[]', space=smem, size = 0x4, offset = 0x4, fixed_abs, tag = 'smem constant byte address 0x4 - core index']
  #allocation1 [shape = 'u32[72,128]{1,0:T(1,128)}', space=vmem, size = 0x9000, scoped, tag = 'internal scratch']
  %s0 = inlined_call_operand.hbm [shape: f32[8,1024], index: 0, kind: input, shape index: {}]
  %s1 = inlined_call_operand.hbm [shape: bf16[1024,128], index: 1, kind: input, shape index: {}]
  %s2 = inlined_call_operand.hbm [shape: bf16[1024,128], index: 2, kind: input, shape index: {}]
  %s3 = inlined_call_operand.vmem [shape: f32[1,128], index: 3, kind: input, shape index: {}]
  %s4 = inlined_call_operand.hbm [shape: f32[8,128], index: 4, kind: output, shape index: {}]
  %s5 = sld [smem:[#allocation0]]
  $region42: #{tpu_custom_call.1} parent=0
    _
  %s7 = ssub.s32 1, %s5
  %s8 = scalar_select 0, %s7, %s5
  $region1: #{tpu_custom_call.1} parent=0
    #allocation2 [shape = 'u8[32768]{0}', space=vmem, size = 0x8000, scoped, tag = 'input window, operand 0, single buffered']
    #allocation3 [shape = 's32[1]{0}', space=sflag, size = 0x4, scoped, tag = 'scoped memory for tpu_custom_call.1']
    #allocation4 [shape = 's32[1]{0}', space=sflag, size = 0x4, scoped, tag = 'scoped memory for tpu_custom_call.1']
    #allocation5 [shape = 'u8[262144]{0}', space=vmem, size = 0x40000, scoped, tag = 'input window, operand 1, single buffered']
    #allocation6 [shape = 's32[1]{0}', space=sflag, size = 0x4, scoped, tag = 'scoped memory for tpu_custom_call.1']
    #allocation7 [shape = 'u8[262144]{0}', space=vmem, size = 0x40000, scoped, tag = 'input window, operand 2, single buffered']
    #allocation8 [shape = 'u8[4096]{0}', space=vmem, size = 0x1000, scoped, tag = 'output window, operand 0, single buffered']
    %9 = vsyncpa [#allocation3], 0
    %10 = vsyncpa [#allocation6], 0
    %11 = vsyncpa [#allocation4], 0
    // Predicated region
    $region2: #{tpu_custom_call.1} parent=1 // pred_check
      _
    $region3: #{tpu_custom_call.1} parent=1 // pred_check_branch
      %13 = sbr.rel (0) target = $region5
    $region4: #{tpu_custom_call.1} parent=1 // pred_region
      %15 = vsyncadd [#allocation3], 0
      %s17 = sshll.u32 %s0, 4
      %s18 = int_to_ptr.hbm [resolvable:$true] %s17
      %s19 = sshll.u32 [#allocation2], 4
      %s20 = int_to_ptr.vmem [resolvable:$true] %s19
      %22 = dma.hbm_to_vmem [thread:$0]  %s18, 1024, %s20, [#allocation3]
    $region5: #{tpu_custom_call.1} parent=1 // pred_fallthru
      _
    // Predicated region
    $region6: #{tpu_custom_call.1} parent=1 // pred_check
      _
    $region7: #{tpu_custom_call.1} parent=1 // pred_check_branch
      %24 = sbr.rel (0) target = $region9
    $region8: #{tpu_custom_call.1} parent=1 // pred_region
      %26 = vsyncadd [#allocation6], 0
      %s27 = sshll.u32 %s1, 4
      %s28 = int_to_ptr.hbm [resolvable:$true] %s27
      %s29 = sshll.u32 [#allocation5], 4
      %s30 = int_to_ptr.vmem [resolvable:$true] %s29
      %35 = dma.hbm_to_vmem [thread:$0]  %s28, 8192, %s30, [#allocation6], 64, 64, 4
    $region9: #{tpu_custom_call.1} parent=1 // pred_fallthru
      _
    // Predicated region
    $region10: #{tpu_custom_call.1} parent=1 // pred_check
      _
    $region11: #{tpu_custom_call.1} parent=1 // pred_check_branch
      %37 = sbr.rel (0) target = $region13
    $region12: #{tpu_custom_call.1} parent=1 // pred_region
      %39 = vsyncadd [#allocation6], 0
      %s40 = sshll.u32 %s2, 4
      %s41 = int_to_ptr.hbm [resolvable:$true] %s40
      %s42 = sshll.u32 [#allocation7], 4
      %s43 = int_to_ptr.vmem [resolvable:$true] %s42
      %48 = dma.hbm_to_vmem [thread:$0]  %s41, 8192, %s43, [#allocation6], 64, 64, 4
    $region13: #{tpu_custom_call.1} parent=1 // pred_fallthru
      _
    // Predicated region
    $region14: #{tpu_custom_call.1} parent=1 // pred_check
      _
    $region15: #{tpu_custom_call.1} parent=1 // pred_check_branch
      %50 = sbr.rel (0) target = $region17
    $region16: #{tpu_custom_call.1} parent=1 // pred_region
      _
    $region17: #{tpu_custom_call.1} parent=1 // pred_fallthru
      _
    // Predicated region
    $region18: #{tpu_custom_call.1} parent=1 // pred_check
      _
    $region19: #{tpu_custom_call.1} parent=1 // pred_check_branch
      %52 = sbr.rel (0) target = $region21
    $region20: #{tpu_custom_call.1} parent=1 // pred_region
      %54 = dma.done [#allocation3], 1024
    $region21: #{tpu_custom_call.1} parent=1 // pred_fallthru
      _
    // Predicated region
    $region22: #{tpu_custom_call.1} parent=1 // pred_check
      _
    $region23: #{tpu_custom_call.1} parent=1 // pred_check_branch
      %56 = sbr.rel (0) target = $region25
    $region24: #{tpu_custom_call.1} parent=1 // pred_region
      %58 = dma.done [#allocation6], 8192
    $region25: #{tpu_custom_call.1} parent=1 // pred_fallthru
      _
    // Predicated region
    $region26: #{tpu_custom_call.1} parent=1 // pred_check
      _
    $region27: #{tpu_custom_call.1} parent=1 // pred_check_branch
      %60 = sbr.rel (0) target = $region29
    $region28: #{tpu_custom_call.1} parent=1 // pred_region
      %62 = dma.done [#allocation6], 8192
    $region29: #{tpu_custom_call.1} parent=1 // pred_fallthru
      _
    %p63 = scmp.eq.s32.totalorder 0, 0
    // Predicated region
    $region30: #{tpu_custom_call.1} parent=1 // pred_check
      %p64 = pneg %p63
    $region31: #{tpu_custom_call.1} parent=1 // pred_check_branch
      %66 = sbr.rel (%p64) target = $region33
    $region32: #{tpu_custom_call.1} parent=1 // pred_region
      %v67 = vld [vmem:[%s3] sm:$0x1]
      %v69 = vperm.slane %v67, 0
      %71 = vst [vmem:[#allocation8] sm:$0xff] %v69
    $region33: #{tpu_custom_call.1} parent=1 // pred_fallthru
      _
    %s72 = smul.u32 0, 1024
    %s73 = sshra.s32 %s72, 3
    %s74 = sand.u32 %s72, 7
    %s75 = smul.addr %s73, 4
    %s76 = scalar_lea.vmem [#allocation5], %s75
    %v77 = vld [vmem:[%s76] sm:$0xf]
    %v78 = vld [vmem:[%s76 + $0x4] sm:$0xf]
    %v79 = vld [vmem:[%s76 + $0x8] sm:$0xf]
    %v80 = vld [vmem:[%s76 + $0xc] sm:$0xf]
    %v81 = vld [vmem:[%s76 + $0x10] sm:$0xf]
    %v82 = vld [vmem:[%s76 + $0x14] sm:$0xf]
    %v83 = vld [vmem:[%s76 + $0x18] sm:$0xf]
    %v84 = vld [vmem:[%s76 + $0x1c] sm:$0xf]
    %v85 = vld [vmem:[%s76 + $0x20] sm:$0xf]
    %v86 = vld [vmem:[%s76 + $0x24] sm:$0xf]
    %v87 = vld [vmem:[%s76 + $0x28] sm:$0xf]
    %v88 = vld [vmem:[%s76 + $0x2c] sm:$0xf]
    %v89 = vld [vmem:[%s76 + $0x30] sm:$0xf]
    %v90 = vld [vmem:[%s76 + $0x34] sm:$0xf]
    %v91 = vld [vmem:[%s76 + $0x38] sm:$0xf]
    %v92 = vld [vmem:[%s76 + $0x3c] sm:$0xf]
    %v93 = vld [vmem:[%s76 + $0x40] sm:$0xf]
    %v94 = vld [vmem:[%s76 + $0x44] sm:$0xf]
    %v95 = vld [vmem:[%s76 + $0x48] sm:$0xf]
    %v96 = vld [vmem:[%s76 + $0x4c] sm:$0xf]
    %v97 = vld [vmem:[%s76 + $0x50] sm:$0xf]
    %v98 = vld [vmem:[%s76 + $0x54] sm:$0xf]
    %v99 = vld [vmem:[%s76 + $0x58] sm:$0xf]
    %v100 = vld [vmem:[%s76 + $0x5c] sm:$0xf]
    %v101 = vld [vmem:[%s76 + $0x60] sm:$0xf]
    %v102 = vld [vmem:[%s76 + $0x64] sm:$0xf]
    %v103 = vld [vmem:[%s76 + $0x68] sm:$0xf]
    %v104 = vld [vmem:[%s76 + $0x6c] sm:$0xf]
    %v105 = vld [vmem:[%s76 + $0x70] sm:$0xf]
    %v106 = vld [vmem:[%s76 + $0x74] sm:$0xf]
    %v107 = vld [vmem:[%s76 + $0x78] sm:$0xf]
    %v108 = vld [vmem:[%s76 + $0x7c] sm:$0xf]
    %v109 = vld [vmem:[%s76 + $0x80] sm:$0xf]
    %v110 = vld [vmem:[%s76 + $0x84] sm:$0xf]
    %v111 = vld [vmem:[%s76 + $0x88] sm:$0xf]
    %v112 = vld [vmem:[%s76 + $0x8c] sm:$0xf]
    %v113 = vld [vmem:[%s76 + $0x90] sm:$0xf]
    %v114 = vld [vmem:[%s76 + $0x94] sm:$0xf]
    %v115 = vld [vmem:[%s76 + $0x98] sm:$0xf]
    %v116 = vld [vmem:[%s76 + $0x9c] sm:$0xf]
    %v117 = vld [vmem:[%s76 + $0xa0] sm:$0xf]
    %v118 = vld [vmem:[%s76 + $0xa4] sm:$0xf]
    %v119 = vld [vmem:[%s76 + $0xa8] sm:$0xf]
    %v120 = vld [vmem:[%s76 + $0xac] sm:$0xf]
    %v121 = vld [vmem:[%s76 + $0xb0] sm:$0xf]
    %v122 = vld [vmem:[%s76 + $0xb4] sm:$0xf]
    %v123 = vld [vmem:[%s76 + $0xb8] sm:$0xf]
    %v124 = vld [vmem:[%s76 + $0xbc] sm:$0xf]
    %v125 = vld [vmem:[%s76 + $0xc0] sm:$0xf]
    %v126 = vld [vmem:[%s76 + $0xc4] sm:$0xf]
    %v127 = vld [vmem:[%s76 + $0xc8] sm:$0xf]
    %v128 = vld [vmem:[%s76 + $0xcc] sm:$0xf]
    %v129 = vld [vmem:[%s76 + $0xd0] sm:$0xf]
    %v130 = vld [vmem:[%s76 + $0xd4] sm:$0xf]
    %v131 = vld [vmem:[%s76 + $0xd8] sm:$0xf]
    %v132 = vld [vmem:[%s76 + $0xdc] sm:$0xf]
    %v133 = vld [vmem:[%s76 + $0xe0] sm:$0xf]
    %v134 = vld [vmem:[%s76 + $0xe4] sm:$0xf]
    %v135 = vld [vmem:[%s76 + $0xe8] sm:$0xf]
    %v136 = vld [vmem:[%s76 + $0xec] sm:$0xf]
    %v137 = vld [vmem:[%s76 + $0xf0] sm:$0xf]
    %v138 = vld [vmem:[%s76 + $0xf4] sm:$0xf]
    %v139 = vld [vmem:[%s76 + $0xf8] sm:$0xf]
    %v140 = vld [vmem:[%s76 + $0xfc] sm:$0xf]
    %v141 = vld [vmem:[%s76 + $0x100] sm:$0xf]
    %v142 = vld [vmem:[%s76 + $0x104] sm:$0xf]
    %v143 = vld [vmem:[%s76 + $0x108] sm:$0xf]
    %v144 = vld [vmem:[%s76 + $0x10c] sm:$0xf]
    %v145 = vld [vmem:[%s76 + $0x110] sm:$0xf]
    %v146 = vld [vmem:[%s76 + $0x114] sm:$0xf]
    %v147 = vld [vmem:[%s76 + $0x118] sm:$0xf]
    %v148 = vld [vmem:[%s76 + $0x11c] sm:$0xf]
    %v149 = vld [vmem:[%s76 + $0x120] sm:$0xf]
    %v150 = vld [vmem:[%s76 + $0x124] sm:$0xf]
    %v151 = vld [vmem:[%s76 + $0x128] sm:$0xf]
    %v152 = vld [vmem:[%s76 + $0x12c] sm:$0xf]
    %v153 = vld [vmem:[%s76 + $0x130] sm:$0xf]
    %v154 = vld [vmem:[%s76 + $0x134] sm:$0xf]
    %v155 = vld [vmem:[%s76 + $0x138] sm:$0xf]
    %v156 = vld [vmem:[%s76 + $0x13c] sm:$0xf]
    %v157 = vld [vmem:[%s76 + $0x140] sm:$0xf]
    %v158 = vld [vmem:[%s76 + $0x144] sm:$0xf]
    %v159 = vld [vmem:[%s76 + $0x148] sm:$0xf]
    %v160 = vld [vmem:[%s76 + $0x14c] sm:$0xf]
    %v161 = vld [vmem:[%s76 + $0x150] sm:$0xf]
    %v162 = vld [vmem:[%s76 + $0x154] sm:$0xf]
    %v163 = vld [vmem:[%s76 + $0x158] sm:$0xf]
    %v164 = vld [vmem:[%s76 + $0x15c] sm:$0xf]
    %v165 = vld [vmem:[%s76 + $0x160] sm:$0xf]
    %v166 = vld [vmem:[%s76 + $0x164] sm:$0xf]
    %v167 = vld [vmem:[%s76 + $0x168] sm:$0xf]
    %v168 = vld [vmem:[%s76 + $0x16c] sm:$0xf]
    %v169 = vld [vmem:[%s76 + $0x170] sm:$0xf]
    %v170 = vld [vmem:[%s76 + $0x174] sm:$0xf]
    %v171 = vld [vmem:[%s76 + $0x178] sm:$0xf]
    %v172 = vld [vmem:[%s76 + $0x17c] sm:$0xf]
    %v173 = vld [vmem:[%s76 + $0x180] sm:$0xf]
    %v174 = vld [vmem:[%s76 + $0x184] sm:$0xf]
    %v175 = vld [vmem:[%s76 + $0x188] sm:$0xf]
    %v176 = vld [vmem:[%s76 + $0x18c] sm:$0xf]
    %v177 = vld [vmem:[%s76 + $0x190] sm:$0xf]
    %v178 = vld [vmem:[%s76 + $0x194] sm:$0xf]
    %v179 = vld [vmem:[%s76 + $0x198] sm:$0xf]
    %v180 = vld [vmem:[%s76 + $0x19c] sm:$0xf]
    %v181 = vld [vmem:[%s76 + $0x1a0] sm:$0xf]
    %v182 = vld [vmem:[%s76 + $0x1a4] sm:$0xf]
    %v183 = vld [vmem:[%s76 + $0x1a8] sm:$0xf]
    %v184 = vld [vmem:[%s76 + $0x1ac] sm:$0xf]
    %v185 = vld [vmem:[%s76 + $0x1b0] sm:$0xf]
    %v186 = vld [vmem:[%s76 + $0x1b4] sm:$0xf]
    %v187 = vld [vmem:[%s76 + $0x1b8] sm:$0xf]
    %v188 = vld [vmem:[%s76 + $0x1bc] sm:$0xf]
    %v189 = vld [vmem:[%s76 + $0x1c0] sm:$0xf]
    %v190 = vld [vmem:[%s76 + $0x1c4] sm:$0xf]
    %v191 = vld [vmem:[%s76 + $0x1c8] sm:$0xf]
    %v192 = vld [vmem:[%s76 + $0x1cc] sm:$0xf]
    %v193 = vld [vmem:[%s76 + $0x1d0] sm:$0xf]
    %v194 = vld [vmem:[%s76 + $0x1d4] sm:$0xf]
    %v195 = vld [vmem:[%s76 + $0x1d8] sm:$0xf]
    %v196 = vld [vmem:[%s76 + $0x1dc] sm:$0xf]
    %v197 = vld [vmem:[%s76 + $0x1e0] sm:$0xf]
    %v198 = vld [vmem:[%s76 + $0x1e4] sm:$0xf]
    %v199 = vld [vmem:[%s76 + $0x1e8] sm:$0xf]
    %v200 = vld [vmem:[%s76 + $0x1ec] sm:$0xf]
    %v201 = vld [vmem:[%s76 + $0x1f0] sm:$0xf]
    %v202 = vld [vmem:[%s76 + $0x1f4] sm:$0xf]
    %v203 = vld [vmem:[%s76 + $0x1f8] sm:$0xf]
    %v204 = vld [vmem:[%s76 + $0x1fc] sm:$0xf]
    %s205 = smul.addr %s73, 4
    %s206 = scalar_lea.vmem [#allocation7], %s205
    %v207 = vld [vmem:[%s206] sm:$0xf]
    %v208 = vld [vmem:[%s206 + $0x4] sm:$0xf]
    %v209 = vld [vmem:[%s206 + $0x8] sm:$0xf]
    %v210 = vld [vmem:[%s206 + $0xc] sm:$0xf]
    %v211 = vld [vmem:[%s206 + $0x10] sm:$0xf]
    %v212 = vld [vmem:[%s206 + $0x14] sm:$0xf]
    %v213 = vld [vmem:[%s206 + $0x18] sm:$0xf]
    %v214 = vld [vmem:[%s206 + $0x1c] sm:$0xf]
    %v215 = vld [vmem:[%s206 + $0x20] sm:$0xf]
    %v216 = vld [vmem:[%s206 + $0x24] sm:$0xf]
    %v217 = vld [vmem:[%s206 + $0x28] sm:$0xf]
    %v218 = vld [vmem:[%s206 + $0x2c] sm:$0xf]
    %v219 = vld [vmem:[%s206 + $0x30] sm:$0xf]
    %v220 = vld [vmem:[%s206 + $0x34] sm:$0xf]
    %v221 = vld [vmem:[%s206 + $0x38] sm:$0xf]
    %v222 = vld [vmem:[%s206 + $0x3c] sm:$0xf]
    %v223 = vld [vmem:[%s206 + $0x40] sm:$0xf]
    %v224 = vld [vmem:[%s206 + $0x44] sm:$0xf]
    %v225 = vld [vmem:[%s206 + $0x48] sm:$0xf]
    %v226 = vld [vmem:[%s206 + $0x4c] sm:$0xf]
    %v227 = vld [vmem:[%s206 + $0x50] sm:$0xf]
    %v228 = vld [vmem:[%s206 + $0x54] sm:$0xf]
    %v229 = vld [vmem:[%s206 + $0x58] sm:$0xf]
    %v230 = vld [vmem:[%s206 + $0x5c] sm:$0xf]
    %v231 = vld [vmem:[%s206 + $0x60] sm:$0xf]
    %v232 = vld [vmem:[%s206 + $0x64] sm:$0xf]
    %v233 = vld [vmem:[%s206 + $0x68] sm:$0xf]
    %v234 = vld [vmem:[%s206 + $0x6c] sm:$0xf]
    %v235 = vld [vmem:[%s206 + $0x70] sm:$0xf]
    %v236 = vld [vmem:[%s206 + $0x74] sm:$0xf]
    %v237 = vld [vmem:[%s206 + $0x78] sm:$0xf]
    %v238 = vld [vmem:[%s206 + $0x7c] sm:$0xf]
    %v239 = vld [vmem:[%s206 + $0x80] sm:$0xf]
    %v240 = vld [vmem:[%s206 + $0x84] sm:$0xf]
    %v241 = vld [vmem:[%s206 + $0x88] sm:$0xf]
    %v242 = vld [vmem:[%s206 + $0x8c] sm:$0xf]
    %v243 = vld [vmem:[%s206 + $0x90] sm:$0xf]
    %v244 = vld [vmem:[%s206 + $0x94] sm:$0xf]
    %v245 = vld [vmem:[%s206 + $0x98] sm:$0xf]
    %v246 = vld [vmem:[%s206 + $0x9c] sm:$0xf]
    %v247 = vld [vmem:[%s206 + $0xa0] sm:$0xf]
    %v248 = vld [vmem:[%s206 + $0xa4] sm:$0xf]
    %v249 = vld [vmem:[%s206 + $0xa8] sm:$0xf]
    %v250 = vld [vmem:[%s206 + $0xac] sm:$0xf]
    %v251 = vld [vmem:[%s206 + $0xb0] sm:$0xf]
    %v252 = vld [vmem:[%s206 + $0xb4] sm:$0xf]
    %v253 = vld [vmem:[%s206 + $0xb8] sm:$0xf]
    %v254 = vld [vmem:[%s206 + $0xbc] sm:$0xf]
    %v255 = vld [vmem:[%s206 + $0xc0] sm:$0xf]
    %v256 = vld [vmem:[%s206 + $0xc4] sm:$0xf]
    %v257 = vld [vmem:[%s206 + $0xc8] sm:$0xf]
    %v258 = vld [vmem:[%s206 + $0xcc] sm:$0xf]
    %v259 = vld [vmem:[%s206 + $0xd0] sm:$0xf]
    %v260 = vld [vmem:[%s206 + $0xd4] sm:$0xf]
    %v261 = vld [vmem:[%s206 + $0xd8] sm:$0xf]
    %v262 = vld [vmem:[%s206 + $0xdc] sm:$0xf]
    %v263 = vld [vmem:[%s206 + $0xe0] sm:$0xf]
    %v264 = vld [vmem:[%s206 + $0xe4] sm:$0xf]
    %v265 = vld [vmem:[%s206 + $0xe8] sm:$0xf]
    %v266 = vld [vmem:[%s206 + $0xec] sm:$0xf]
    %v267 = vld [vmem:[%s206 + $0xf0] sm:$0xf]
    %v268 = vld [vmem:[%s206 + $0xf4] sm:$0xf]
    %v269 = vld [vmem:[%s206 + $0xf8] sm:$0xf]
    %v270 = vld [vmem:[%s206 + $0xfc] sm:$0xf]
    %v271 = vld [vmem:[%s206 + $0x100] sm:$0xf]
    %v272 = vld [vmem:[%s206 + $0x104] sm:$0xf]
    %v273 = vld [vmem:[%s206 + $0x108] sm:$0xf]
    %v274 = vld [vmem:[%s206 + $0x10c] sm:$0xf]
    %v275 = vld [vmem:[%s206 + $0x110] sm:$0xf]
    %v276 = vld [vmem:[%s206 + $0x114] sm:$0xf]
    %v277 = vld [vmem:[%s206 + $0x118] sm:$0xf]
    %v278 = vld [vmem:[%s206 + $0x11c] sm:$0xf]
    %v279 = vld [vmem:[%s206 + $0x120] sm:$0xf]
    %v280 = vld [vmem:[%s206 + $0x124] sm:$0xf]
    %v281 = vld [vmem:[%s206 + $0x128] sm:$0xf]
    %v282 = vld [vmem:[%s206 + $0x12c] sm:$0xf]
    %v283 = vld [vmem:[%s206 + $0x130] sm:$0xf]
    %v284 = vld [vmem:[%s206 + $0x134] sm:$0xf]
    %v285 = vld [vmem:[%s206 + $0x138] sm:$0xf]
    %v286 = vld [vmem:[%s206 + $0x13c] sm:$0xf]
    %v287 = vld [vmem:[%s206 + $0x140] sm:$0xf]
    %v288 = vld [vmem:[%s206 + $0x144] sm:$0xf]
    %v289 = vld [vmem:[%s206 + $0x148] sm:$0xf]
    %v290 = vld [vmem:[%s206 + $0x14c] sm:$0xf]
    %v291 = vld [vmem:[%s206 + $0x150] sm:$0xf]
    %v292 = vld [vmem:[%s206 + $0x154] sm:$0xf]
    %v293 = vld [vmem:[%s206 + $0x158] sm:$0xf]
    %v294 = vld [vmem:[%s206 + $0x15c] sm:$0xf]
    %v295 = vld [vmem:[%s206 + $0x160] sm:$0xf]
    %v296 = vld [vmem:[%s206 + $0x164] sm:$0xf]
    %v297 = vld [vmem:[%s206 + $0x168] sm:$0xf]
    %v298 = vld [vmem:[%s206 + $0x16c] sm:$0xf]
    %v299 = vld [vmem:[%s206 + $0x170] sm:$0xf]
    %v300 = vld [vmem:[%s206 + $0x174] sm:$0xf]
    %v301 = vld [vmem:[%s206 + $0x178] sm:$0xf]
    %v302 = vld [vmem:[%s206 + $0x17c] sm:$0xf]
    %v303 = vld [vmem:[%s206 + $0x180] sm:$0xf]
    %v304 = vld [vmem:[%s206 + $0x184] sm:$0xf]
    %v305 = vld [vmem:[%s206 + $0x188] sm:$0xf]
    %v306 = vld [vmem:[%s206 + $0x18c] sm:$0xf]
    %v307 = vld [vmem:[%s206 + $0x190] sm:$0xf]
    %v308 = vld [vmem:[%s206 + $0x194] sm:$0xf]
    %v309 = vld [vmem:[%s206 + $0x198] sm:$0xf]
    %v310 = vld [vmem:[%s206 + $0x19c] sm:$0xf]
    %v311 = vld [vmem:[%s206 + $0x1a0] sm:$0xf]
    %v312 = vld [vmem:[%s206 + $0x1a4] sm:$0xf]
    %v313 = vld [vmem:[%s206 + $0x1a8] sm:$0xf]
    %v314 = vld [vmem:[%s206 + $0x1ac] sm:$0xf]
    %v315 = vld [vmem:[%s206 + $0x1b0] sm:$0xf]
    %v316 = vld [vmem:[%s206 + $0x1b4] sm:$0xf]
    %v317 = vld [vmem:[%s206 + $0x1b8] sm:$0xf]
    %v318 = vld [vmem:[%s206 + $0x1bc] sm:$0xf]
    %v319 = vld [vmem:[%s206 + $0x1c0] sm:$0xf]
    %v320 = vld [vmem:[%s206 + $0x1c4] sm:$0xf]
    %v321 = vld [vmem:[%s206 + $0x1c8] sm:$0xf]
    %v322 = vld [vmem:[%s206 + $0x1cc] sm:$0xf]
    %v323 = vld [vmem:[%s206 + $0x1d0] sm:$0xf]
    %v324 = vld [vmem:[%s206 + $0x1d4] sm:$0xf]
    %v325 = vld [vmem:[%s206 + $0x1d8] sm:$0xf]
    %v326 = vld [vmem:[%s206 + $0x1dc] sm:$0xf]
    %v327 = vld [vmem:[%s206 + $0x1e0] sm:$0xf]
    %v328 = vld [vmem:[%s206 + $0x1e4] sm:$0xf]
    %v329 = vld [vmem:[%s206 + $0x1e8] sm:$0xf]
    %v330 = vld [vmem:[%s206 + $0x1ec] sm:$0xf]
    %v331 = vld [vmem:[%s206 + $0x1f0] sm:$0xf]
    %v332 = vld [vmem:[%s206 + $0x1f4] sm:$0xf]
    %v333 = vld [vmem:[%s206 + $0x1f8] sm:$0xf]
    %v334 = vld [vmem:[%s206 + $0x1fc] sm:$0xf]
    %v335 = vld [vmem:[#allocation2] sm:$0xff]
    %v336 = vld [vmem:[#allocation2 + $0x8] sm:$0xff]
    %v337 = vld [vmem:[#allocation2 + $0x10] sm:$0xff]
    %v338 = vld [vmem:[#allocation2 + $0x18] sm:$0xff]
    %v339 = vld [vmem:[#allocation2 + $0x20] sm:$0xff]
    %v340 = vld [vmem:[#allocation2 + $0x28] sm:$0xff]
    %v341 = vld [vmem:[#allocation2 + $0x30] sm:$0xff]
    %v342 = vld [vmem:[#allocation2 + $0x38] sm:$0xff]
    %v343 = vpack.c.bf16 %v335, %v335
    %v344 = vpack.c.bf16 %v336, %v336
    %v345 = vpack.c.bf16 %v337, %v337
    %v346 = vpack.c.bf16 %v338, %v338
    %v347 = vpack.c.bf16 %v339, %v339
    %v348 = vpack.c.bf16 %v340, %v340
    %v349 = vpack.c.bf16 %v341, %v341
    %v350 = vpack.c.bf16 %v342, %v342
    %v351 = vmul.f32 %v335, %v335
    %v352 = vmul.f32 %v336, %v336
    %v353 = vmul.f32 %v337, %v337
    %v354 = vmul.f32 %v338, %v338
    %v355 = vmul.f32 %v339, %v339
    %v356 = vmul.f32 %v340, %v340
    %v357 = vmul.f32 %v341, %v341
    %v358 = vmul.f32 %v342, %v342
    %v359 = vpack.c.bf16 %v351, %v351
    %v360 = vpack.c.bf16 %v352, %v352
    %v361 = vpack.c.bf16 %v353, %v353
    %v362 = vpack.c.bf16 %v354, %v354
    %v363 = vpack.c.bf16 %v355, %v355
    %v364 = vpack.c.bf16 %v356, %v356
    %v365 = vpack.c.bf16 %v357, %v357
    %v366 = vpack.c.bf16 %v358, %v358
    %v367 = vld [vmem:[#allocation8] sm:$0xff]
    %v496 = vunpack.c.l.b16 %v207
    %v497 = vunpack.c.l.b16 %v208
    %v498 = vunpack.c.l.b16 %v209
    %v499 = vunpack.c.l.b16 %v210
    %v500 = vunpack.c.l.b16 %v211
    %v501 = vunpack.c.l.b16 %v212
    %v502 = vunpack.c.l.b16 %v213
    %v503 = vunpack.c.l.b16 %v214
    %v504 = vunpack.c.l.b16 %v215
    %v505 = vunpack.c.l.b16 %v216
    %v506 = vunpack.c.l.b16 %v217
    %v507 = vunpack.c.l.b16 %v218
    %v508 = vunpack.c.l.b16 %v219
    %v509 = vunpack.c.l.b16 %v220
    %v510 = vunpack.c.l.b16 %v221
    %v511 = vunpack.c.l.b16 %v222
    %v512 = vunpack.c.l.b16 %v223
    %v513 = vunpack.c.l.b16 %v224
    %v514 = vunpack.c.l.b16 %v225
    %v515 = vunpack.c.l.b16 %v226
    %v516 = vunpack.c.l.b16 %v227
    %v517 = vunpack.c.l.b16 %v228
    %v518 = vunpack.c.l.b16 %v229
    %v519 = vunpack.c.l.b16 %v230
    %v520 = vunpack.c.l.b16 %v231
    %v521 = vunpack.c.l.b16 %v232
    %v522 = vunpack.c.l.b16 %v233
    %v523 = vunpack.c.l.b16 %v234
    %v524 = vunpack.c.l.b16 %v235
    %v525 = vunpack.c.l.b16 %v236
    %v526 = vunpack.c.l.b16 %v237
    %v527 = vunpack.c.l.b16 %v238
    %v528 = vunpack.c.l.b16 %v239
    %v529 = vunpack.c.l.b16 %v240
    %v530 = vunpack.c.l.b16 %v241
    %v531 = vunpack.c.l.b16 %v242
    %v532 = vunpack.c.l.b16 %v243
    %v533 = vunpack.c.l.b16 %v244
    %v534 = vunpack.c.l.b16 %v245
    %v535 = vunpack.c.l.b16 %v246
    %v536 = vunpack.c.l.b16 %v247
    %v537 = vunpack.c.l.b16 %v248
    %v538 = vunpack.c.l.b16 %v249
    %v539 = vunpack.c.l.b16 %v250
    %v540 = vunpack.c.l.b16 %v251
    %v541 = vunpack.c.l.b16 %v252
    %v542 = vunpack.c.l.b16 %v253
    %v543 = vunpack.c.l.b16 %v254
    %v544 = vunpack.c.l.b16 %v255
    %v545 = vunpack.c.l.b16 %v256
    %v546 = vunpack.c.l.b16 %v257
    %v547 = vunpack.c.l.b16 %v258
    %v548 = vunpack.c.l.b16 %v259
    %v549 = vunpack.c.l.b16 %v260
    %v550 = vunpack.c.l.b16 %v261
    %v551 = vunpack.c.l.b16 %v262
    %v552 = vunpack.c.l.b16 %v263
    %v553 = vunpack.c.l.b16 %v264
    %v554 = vunpack.c.l.b16 %v265
    %v555 = vunpack.c.l.b16 %v266
    %v556 = vunpack.c.l.b16 %v267
    %v557 = vunpack.c.l.b16 %v268
    %v558 = vunpack.c.l.b16 %v269
    %v559 = vunpack.c.l.b16 %v270
    %v560 = vunpack.c.l.b16 %v271
    %v561 = vunpack.c.l.b16 %v272
    %v562 = vunpack.c.l.b16 %v273
    %v563 = vunpack.c.l.b16 %v274
    %v564 = vunpack.c.l.b16 %v275
    %v565 = vunpack.c.l.b16 %v276
    %v566 = vunpack.c.l.b16 %v277
    %v567 = vunpack.c.l.b16 %v278
    %v568 = vunpack.c.l.b16 %v279
    %v569 = vunpack.c.l.b16 %v280
    %v570 = vunpack.c.l.b16 %v281
    %v571 = vunpack.c.l.b16 %v282
    %v572 = vunpack.c.l.b16 %v283
    %v573 = vunpack.c.l.b16 %v284
    %v574 = vunpack.c.l.b16 %v285
    %v575 = vunpack.c.l.b16 %v286
    %v576 = vunpack.c.l.b16 %v287
    %v577 = vunpack.c.l.b16 %v288
    %v578 = vunpack.c.l.b16 %v289
    %v579 = vunpack.c.l.b16 %v290
    %v580 = vunpack.c.l.b16 %v291
    %v581 = vunpack.c.l.b16 %v292
    %v582 = vunpack.c.l.b16 %v293
    %v583 = vunpack.c.l.b16 %v294
    %v584 = vunpack.c.l.b16 %v295
    %v585 = vunpack.c.l.b16 %v296
    %v586 = vunpack.c.l.b16 %v297
    %v587 = vunpack.c.l.b16 %v298
    %v588 = vunpack.c.l.b16 %v299
    %v589 = vunpack.c.l.b16 %v300
    %v590 = vunpack.c.l.b16 %v301
    %v591 = vunpack.c.l.b16 %v302
    %v592 = vunpack.c.l.b16 %v303
    %v593 = vunpack.c.l.b16 %v304
    %v594 = vunpack.c.l.b16 %v305
    %v595 = vunpack.c.l.b16 %v306
    %v596 = vunpack.c.l.b16 %v307
    %v597 = vunpack.c.l.b16 %v308
    %v598 = vunpack.c.l.b16 %v309
    %v599 = vunpack.c.l.b16 %v310
    %v600 = vunpack.c.l.b16 %v311
    %v601 = vunpack.c.l.b16 %v312
    %v602 = vunpack.c.l.b16 %v313
    %v603 = vunpack.c.l.b16 %v314
    %v604 = vunpack.c.l.b16 %v315
    %v605 = vunpack.c.l.b16 %v316
    %v606 = vunpack.c.l.b16 %v317
    %v607 = vunpack.c.l.b16 %v318
    %v608 = vunpack.c.l.b16 %v319
    %v609 = vunpack.c.l.b16 %v320
    %v610 = vunpack.c.l.b16 %v321
    %v611 = vunpack.c.l.b16 %v322
    %v612 = vunpack.c.l.b16 %v323
    %v613 = vunpack.c.l.b16 %v324
    %v614 = vunpack.c.l.b16 %v325
    %v615 = vunpack.c.l.b16 %v326
    %v616 = vunpack.c.l.b16 %v327
    %v617 = vunpack.c.l.b16 %v328
    %v618 = vunpack.c.l.b16 %v329
    %v619 = vunpack.c.l.b16 %v330
    %v620 = vunpack.c.l.b16 %v331
    %v621 = vunpack.c.l.b16 %v332
    %v622 = vunpack.c.l.b16 %v333
    %v623 = vunpack.c.l.b16 %v334
    %v624 = vpack.c.b16 %v497, %v496
    %v625 = vpack.c.b16 %v499, %v498
    %v626 = vpack.c.b16 %v501, %v500
    %v627 = vpack.c.b16 %v503, %v502
    %v628 = vpack.c.b16 %v505, %v504
    %v629 = vpack.c.b16 %v507, %v506
    %v630 = vpack.c.b16 %v509, %v508
    %v631 = vpack.c.b16 %v511, %v510
    %v632 = vpack.c.b16 %v513, %v512
    %v633 = vpack.c.b16 %v515, %v514
    %v634 = vpack.c.b16 %v517, %v516
    %v635 = vpack.c.b16 %v519, %v518
    %v636 = vpack.c.b16 %v521, %v520
    %v637 = vpack.c.b16 %v523, %v522
    %v638 = vpack.c.b16 %v525, %v524
    %v639 = vpack.c.b16 %v527, %v526
    %v640 = vpack.c.b16 %v529, %v528
    %v641 = vpack.c.b16 %v531, %v530
    %v642 = vpack.c.b16 %v533, %v532
    %v643 = vpack.c.b16 %v535, %v534
    %v644 = vpack.c.b16 %v537, %v536
    %v645 = vpack.c.b16 %v539, %v538
    %v646 = vpack.c.b16 %v541, %v540
    %v647 = vpack.c.b16 %v543, %v542
    %v648 = vpack.c.b16 %v545, %v544
    %v649 = vpack.c.b16 %v547, %v546
    %v650 = vpack.c.b16 %v549, %v548
    %v651 = vpack.c.b16 %v551, %v550
    %v652 = vpack.c.b16 %v553, %v552
    %v653 = vpack.c.b16 %v555, %v554
    %v654 = vpack.c.b16 %v557, %v556
    %v655 = vpack.c.b16 %v559, %v558
    %v656 = vpack.c.b16 %v561, %v560
    %v657 = vpack.c.b16 %v563, %v562
    %v658 = vpack.c.b16 %v565, %v564
    %v659 = vpack.c.b16 %v567, %v566
    %v660 = vpack.c.b16 %v569, %v568
    %v661 = vpack.c.b16 %v571, %v570
    %v662 = vpack.c.b16 %v573, %v572
    %v663 = vpack.c.b16 %v575, %v574
    %v664 = vpack.c.b16 %v577, %v576
    %v665 = vpack.c.b16 %v579, %v578
    %v666 = vpack.c.b16 %v581, %v580
    %v667 = vpack.c.b16 %v583, %v582
    %v668 = vpack.c.b16 %v585, %v584
    %v669 = vpack.c.b16 %v587, %v586
    %v670 = vpack.c.b16 %v589, %v588
    %v671 = vpack.c.b16 %v591, %v590
    %v672 = vpack.c.b16 %v593, %v592
    %v673 = vpack.c.b16 %v595, %v594
    %v674 = vpack.c.b16 %v597, %v596
    %v675 = vpack.c.b16 %v599, %v598
    %v676 = vpack.c.b16 %v601, %v600
    %v677 = vpack.c.b16 %v603, %v602
    %v678 = vpack.c.b16 %v605, %v604
    %v679 = vpack.c.b16 %v607, %v606
    %v680 = vpack.c.b16 %v609, %v608
    %v681 = vpack.c.b16 %v611, %v610
    %v682 = vpack.c.b16 %v613, %v612
    %v683 = vpack.c.b16 %v615, %v614
    %v684 = vpack.c.b16 %v617, %v616
    %v685 = vpack.c.b16 %v619, %v618
    %v686 = vpack.c.b16 %v621, %v620
    %v687 = vpack.c.b16 %v623, %v622
    %752 = vmatpush.bf16.msra.mxu0 %v631
    %753 = vmatpush.bf16.msra.mxu0 %v630
    %754 = vmatpush.bf16.msra.mxu0 %v629
    %755 = vmatpush.bf16.msra.mxu0 %v628
    %756 = vmatpush.bf16.msra.mxu0 %v627
    %757 = vmatpush.bf16.msra.mxu0 %v626
    %758 = vmatpush.bf16.msra.mxu0 %v625
    %759 = vmatpush.bf16.msra.mxu0 %v624
    %760 = vmatmul.bf16.gmra.mxu0 %v359
    %v761 = vpop.f32.mrf.mxu0
    %v762 = vadd.f32 0.0, %v761
    %v763 = vpop.f32.mrf.mxu0
    %764 = vdwg.mxu0
    %765 = vmatpush.bf16.msra.mxu0 %v639
    %766 = vmatpush.bf16.msra.mxu0 %v638
    %767 = vmatpush.bf16.msra.mxu0 %v637
    %768 = vmatpush.bf16.msra.mxu0 %v636
    %769 = vmatpush.bf16.msra.mxu0 %v635
    %770 = vmatpush.bf16.msra.mxu0 %v634
    %771 = vmatpush.bf16.msra.mxu0 %v633
    %772 = vmatpush.bf16.msra.mxu0 %v632
    %773 = vmatmul.bf16.gmra.mxu0 %v360
    %v774 = vpop.f32.mrf.mxu0
    %v775 = vadd.f32 %v762, %v774
    %v776 = vpop.f32.mrf.mxu0
    %777 = vdwg.mxu0
    %778 = vmatpush.bf16.msra.mxu0 %v647
    %779 = vmatpush.bf16.msra.mxu0 %v646
    %780 = vmatpush.bf16.msra.mxu0 %v645
    %781 = vmatpush.bf16.msra.mxu0 %v644
    %782 = vmatpush.bf16.msra.mxu0 %v643
    %783 = vmatpush.bf16.msra.mxu0 %v642
    %784 = vmatpush.bf16.msra.mxu0 %v641
    %785 = vmatpush.bf16.msra.mxu0 %v640
    %786 = vmatmul.bf16.gmra.mxu0 %v361
    %v787 = vpop.f32.mrf.mxu0
    %v788 = vadd.f32 %v775, %v787
    %v789 = vpop.f32.mrf.mxu0
    %790 = vdwg.mxu0
    %791 = vmatpush.bf16.msra.mxu0 %v655
    %792 = vmatpush.bf16.msra.mxu0 %v654
    %793 = vmatpush.bf16.msra.mxu0 %v653
    %794 = vmatpush.bf16.msra.mxu0 %v652
    %795 = vmatpush.bf16.msra.mxu0 %v651
    %796 = vmatpush.bf16.msra.mxu0 %v650
    %797 = vmatpush.bf16.msra.mxu0 %v649
    %798 = vmatpush.bf16.msra.mxu0 %v648
    %799 = vmatmul.bf16.gmra.mxu0 %v362
    %v800 = vpop.f32.mrf.mxu0
    %v801 = vadd.f32 %v788, %v800
    %v802 = vpop.f32.mrf.mxu0
    %803 = vdwg.mxu0
    %804 = vmatpush.bf16.msra.mxu0 %v663
    %805 = vmatpush.bf16.msra.mxu0 %v662
    %806 = vmatpush.bf16.msra.mxu0 %v661
    %807 = vmatpush.bf16.msra.mxu0 %v660
    %808 = vmatpush.bf16.msra.mxu0 %v659
    %809 = vmatpush.bf16.msra.mxu0 %v658
    %810 = vmatpush.bf16.msra.mxu0 %v657
    %811 = vmatpush.bf16.msra.mxu0 %v656
    %812 = vmatmul.bf16.gmra.mxu0 %v363
    %v813 = vpop.f32.mrf.mxu0
    %v814 = vadd.f32 %v801, %v813
    %v815 = vpop.f32.mrf.mxu0
    %816 = vdwg.mxu0
    %817 = vmatpush.bf16.msra.mxu0 %v671
    %818 = vmatpush.bf16.msra.mxu0 %v670
    %819 = vmatpush.bf16.msra.mxu0 %v669
    %820 = vmatpush.bf16.msra.mxu0 %v668
    %821 = vmatpush.bf16.msra.mxu0 %v667
    %822 = vmatpush.bf16.msra.mxu0 %v666
    %823 = vmatpush.bf16.msra.mxu0 %v665
    %824 = vmatpush.bf16.msra.mxu0 %v664
    %825 = vmatmul.bf16.gmra.mxu0 %v364
    %v826 = vpop.f32.mrf.mxu0
    %v827 = vadd.f32 %v814, %v826
    %v828 = vpop.f32.mrf.mxu0
    %829 = vdwg.mxu0
    %830 = vmatpush.bf16.msra.mxu0 %v679
    %831 = vmatpush.bf16.msra.mxu0 %v678
    %832 = vmatpush.bf16.msra.mxu0 %v677
    %833 = vmatpush.bf16.msra.mxu0 %v676
    %834 = vmatpush.bf16.msra.mxu0 %v675
    %835 = vmatpush.bf16.msra.mxu0 %v674
    %836 = vmatpush.bf16.msra.mxu0 %v673
    %837 = vmatpush.bf16.msra.mxu0 %v672
    %838 = vmatmul.bf16.gmra.mxu0 %v365
    %v839 = vpop.f32.mrf.mxu0
    %v840 = vadd.f32 %v827, %v839
    %v841 = vpop.f32.mrf.mxu0
    %842 = vdwg.mxu0
    %843 = vmatpush.bf16.msra.mxu0 %v687
    %844 = vmatpush.bf16.msra.mxu0 %v686
    %845 = vmatpush.bf16.msra.mxu0 %v685
    %846 = vmatpush.bf16.msra.mxu0 %v684
    %847 = vmatpush.bf16.msra.mxu0 %v683
    %848 = vmatpush.bf16.msra.mxu0 %v682
    %849 = vmatpush.bf16.msra.mxu0 %v681
    %850 = vmatpush.bf16.msra.mxu0 %v680
    %851 = vmatmul.bf16.gmra.mxu0 %v366
    %v852 = vpop.f32.mrf.mxu0
    %v853 = vadd.f32 %v840, %v852
    %v854 = vpop.f32.mrf.mxu0
    %855 = vdwg.mxu0
    %v984 = vunpack.c.l.b16 %v77
    %v985 = vunpack.c.l.b16 %v78
    %v986 = vunpack.c.l.b16 %v79
    %v987 = vunpack.c.l.b16 %v80
    %v988 = vunpack.c.l.b16 %v81
    %v989 = vunpack.c.l.b16 %v82
    %v990 = vunpack.c.l.b16 %v83
    %v991 = vunpack.c.l.b16 %v84
    %v992 = vunpack.c.l.b16 %v85
    %v993 = vunpack.c.l.b16 %v86
    %v994 = vunpack.c.l.b16 %v87
    %v995 = vunpack.c.l.b16 %v88
    %v996 = vunpack.c.l.b16 %v89
    %v997 = vunpack.c.l.b16 %v90
    %v998 = vunpack.c.l.b16 %v91
    %v999 = vunpack.c.l.b16 %v92
    %v1000 = vunpack.c.l.b16 %v93
    %v1001 = vunpack.c.l.b16 %v94
    %v1002 = vunpack.c.l.b16 %v95
    %v1003 = vunpack.c.l.b16 %v96
    %v1004 = vunpack.c.l.b16 %v97
    %v1005 = vunpack.c.l.b16 %v98
    %v1006 = vunpack.c.l.b16 %v99
    %v1007 = vunpack.c.l.b16 %v100
    %v1008 = vunpack.c.l.b16 %v101
    %v1009 = vunpack.c.l.b16 %v102
    %v1010 = vunpack.c.l.b16 %v103
    %v1011 = vunpack.c.l.b16 %v104
    %v1012 = vunpack.c.l.b16 %v105
    %v1013 = vunpack.c.l.b16 %v106
    %v1014 = vunpack.c.l.b16 %v107
    %v1015 = vunpack.c.l.b16 %v108
    %v1016 = vunpack.c.l.b16 %v109
    %v1017 = vunpack.c.l.b16 %v110
    %v1018 = vunpack.c.l.b16 %v111
    %v1019 = vunpack.c.l.b16 %v112
    %v1020 = vunpack.c.l.b16 %v113
    %v1021 = vunpack.c.l.b16 %v114
    %v1022 = vunpack.c.l.b16 %v115
    %v1023 = vunpack.c.l.b16 %v116
    %v1024 = vunpack.c.l.b16 %v117
    %v1025 = vunpack.c.l.b16 %v118
    %v1026 = vunpack.c.l.b16 %v119
    %v1027 = vunpack.c.l.b16 %v120
    %v1028 = vunpack.c.l.b16 %v121
    %v1029 = vunpack.c.l.b16 %v122
    %v1030 = vunpack.c.l.b16 %v123
    %v1031 = vunpack.c.l.b16 %v124
    %v1032 = vunpack.c.l.b16 %v125
    %v1033 = vunpack.c.l.b16 %v126
    %v1034 = vunpack.c.l.b16 %v127
    %v1035 = vunpack.c.l.b16 %v128
    %v1036 = vunpack.c.l.b16 %v129
    %v1037 = vunpack.c.l.b16 %v130
    %v1038 = vunpack.c.l.b16 %v131
    %v1039 = vunpack.c.l.b16 %v132
    %v1040 = vunpack.c.l.b16 %v133
    %v1041 = vunpack.c.l.b16 %v134
    %v1042 = vunpack.c.l.b16 %v135
    %v1043 = vunpack.c.l.b16 %v136
    %v1044 = vunpack.c.l.b16 %v137
    %v1045 = vunpack.c.l.b16 %v138
    %v1046 = vunpack.c.l.b16 %v139
    %v1047 = vunpack.c.l.b16 %v140
    %v1048 = vunpack.c.l.b16 %v141
    %v1049 = vunpack.c.l.b16 %v142
    %v1050 = vunpack.c.l.b16 %v143
    %v1051 = vunpack.c.l.b16 %v144
    %v1052 = vunpack.c.l.b16 %v145
    %v1053 = vunpack.c.l.b16 %v146
    %v1054 = vunpack.c.l.b16 %v147
    %v1055 = vunpack.c.l.b16 %v148
    %v1056 = vunpack.c.l.b16 %v149
    %v1057 = vunpack.c.l.b16 %v150
    %v1058 = vunpack.c.l.b16 %v151
    %v1059 = vunpack.c.l.b16 %v152
    %v1060 = vunpack.c.l.b16 %v153
    %v1061 = vunpack.c.l.b16 %v154
    %v1062 = vunpack.c.l.b16 %v155
    %v1063 = vunpack.c.l.b16 %v156
    %v1064 = vunpack.c.l.b16 %v157
    %v1065 = vunpack.c.l.b16 %v158
    %v1066 = vunpack.c.l.b16 %v159
    %v1067 = vunpack.c.l.b16 %v160
    %v1068 = vunpack.c.l.b16 %v161
    %v1069 = vunpack.c.l.b16 %v162
    %v1070 = vunpack.c.l.b16 %v163
    %v1071 = vunpack.c.l.b16 %v164
    %v1072 = vunpack.c.l.b16 %v165
    %v1073 = vunpack.c.l.b16 %v166
    %v1074 = vunpack.c.l.b16 %v167
    %v1075 = vunpack.c.l.b16 %v168
    %v1076 = vunpack.c.l.b16 %v169
    %v1077 = vunpack.c.l.b16 %v170
    %v1078 = vunpack.c.l.b16 %v171
    %v1079 = vunpack.c.l.b16 %v172
    %v1080 = vunpack.c.l.b16 %v173
    %v1081 = vunpack.c.l.b16 %v174
    %v1082 = vunpack.c.l.b16 %v175
    %v1083 = vunpack.c.l.b16 %v176
    %v1084 = vunpack.c.l.b16 %v177
    %v1085 = vunpack.c.l.b16 %v178
    %v1086 = vunpack.c.l.b16 %v179
    %v1087 = vunpack.c.l.b16 %v180
    %v1088 = vunpack.c.l.b16 %v181
    %v1089 = vunpack.c.l.b16 %v182
    %v1090 = vunpack.c.l.b16 %v183
    %v1091 = vunpack.c.l.b16 %v184
    %v1092 = vunpack.c.l.b16 %v185
    %v1093 = vunpack.c.l.b16 %v186
    %v1094 = vunpack.c.l.b16 %v187
    %v1095 = vunpack.c.l.b16 %v188
    %v1096 = vunpack.c.l.b16 %v189
    %v1097 = vunpack.c.l.b16 %v190
    %v1098 = vunpack.c.l.b16 %v191
    %v1099 = vunpack.c.l.b16 %v192
    %v1100 = vunpack.c.l.b16 %v193
    %v1101 = vunpack.c.l.b16 %v194
    %v1102 = vunpack.c.l.b16 %v195
    %v1103 = vunpack.c.l.b16 %v196
    %v1104 = vunpack.c.l.b16 %v197
    %v1105 = vunpack.c.l.b16 %v198
    %v1106 = vunpack.c.l.b16 %v199
    %v1107 = vunpack.c.l.b16 %v200
    %v1108 = vunpack.c.l.b16 %v201
    %v1109 = vunpack.c.l.b16 %v202
    %v1110 = vunpack.c.l.b16 %v203
    %v1111 = vunpack.c.l.b16 %v204
    %v1112 = vpack.c.b16 %v985, %v984
    %v1113 = vpack.c.b16 %v987, %v986
    %v1114 = vpack.c.b16 %v989, %v988
    %v1115 = vpack.c.b16 %v991, %v990
    %v1116 = vpack.c.b16 %v993, %v992
    %v1117 = vpack.c.b16 %v995, %v994
    %v1118 = vpack.c.b16 %v997, %v996
    %v1119 = vpack.c.b16 %v999, %v998
    %v1120 = vpack.c.b16 %v1001, %v1000
    %v1121 = vpack.c.b16 %v1003, %v1002
    %v1122 = vpack.c.b16 %v1005, %v1004
    %v1123 = vpack.c.b16 %v1007, %v1006
    %v1124 = vpack.c.b16 %v1009, %v1008
    %v1125 = vpack.c.b16 %v1011, %v1010
    %v1126 = vpack.c.b16 %v1013, %v1012
    %v1127 = vpack.c.b16 %v1015, %v1014
    %v1128 = vpack.c.b16 %v1017, %v1016
    %v1129 = vpack.c.b16 %v1019, %v1018
    %v1130 = vpack.c.b16 %v1021, %v1020
    %v1131 = vpack.c.b16 %v1023, %v1022
    %v1132 = vpack.c.b16 %v1025, %v1024
    %v1133 = vpack.c.b16 %v1027, %v1026
    %v1134 = vpack.c.b16 %v1029, %v1028
    %v1135 = vpack.c.b16 %v1031, %v1030
    %v1136 = vpack.c.b16 %v1033, %v1032
    %v1137 = vpack.c.b16 %v1035, %v1034
    %v1138 = vpack.c.b16 %v1037, %v1036
    %v1139 = vpack.c.b16 %v1039, %v1038
    %v1140 = vpack.c.b16 %v1041, %v1040
    %v1141 = vpack.c.b16 %v1043, %v1042
    %v1142 = vpack.c.b16 %v1045, %v1044
    %v1143 = vpack.c.b16 %v1047, %v1046
    %v1144 = vpack.c.b16 %v1049, %v1048
    %v1145 = vpack.c.b16 %v1051, %v1050
    %v1146 = vpack.c.b16 %v1053, %v1052
    %v1147 = vpack.c.b16 %v1055, %v1054
    %v1148 = vpack.c.b16 %v1057, %v1056
    %v1149 = vpack.c.b16 %v1059, %v1058
    %v1150 = vpack.c.b16 %v1061, %v1060
    %v1151 = vpack.c.b16 %v1063, %v1062
    %v1152 = vpack.c.b16 %v1065, %v1064
    %v1153 = vpack.c.b16 %v1067, %v1066
    %v1154 = vpack.c.b16 %v1069, %v1068
    %v1155 = vpack.c.b16 %v1071, %v1070
    %v1156 = vpack.c.b16 %v1073, %v1072
    %v1157 = vpack.c.b16 %v1075, %v1074
    %v1158 = vpack.c.b16 %v1077, %v1076
    %v1159 = vpack.c.b16 %v1079, %v1078
    %v1160 = vpack.c.b16 %v1081, %v1080
    %v1161 = vpack.c.b16 %v1083, %v1082
    %v1162 = vpack.c.b16 %v1085, %v1084
    %v1163 = vpack.c.b16 %v1087, %v1086
    %v1164 = vpack.c.b16 %v1089, %v1088
    %v1165 = vpack.c.b16 %v1091, %v1090
    %v1166 = vpack.c.b16 %v1093, %v1092
    %v1167 = vpack.c.b16 %v1095, %v1094
    %v1168 = vpack.c.b16 %v1097, %v1096
    %v1169 = vpack.c.b16 %v1099, %v1098
    %v1170 = vpack.c.b16 %v1101, %v1100
    %v1171 = vpack.c.b16 %v1103, %v1102
    %v1172 = vpack.c.b16 %v1105, %v1104
    %v1173 = vpack.c.b16 %v1107, %v1106
    %v1174 = vpack.c.b16 %v1109, %v1108
    %v1175 = vpack.c.b16 %v1111, %v1110
    %1240 = vmatpush.bf16.msra.mxu0 %v1119
    %1241 = vmatpush.bf16.msra.mxu0 %v1118
    %1242 = vmatpush.bf16.msra.mxu0 %v1117
    %1243 = vmatpush.bf16.msra.mxu0 %v1116
    %1244 = vmatpush.bf16.msra.mxu0 %v1115
    %1245 = vmatpush.bf16.msra.mxu0 %v1114
    %1246 = vmatpush.bf16.msra.mxu0 %v1113
    %1247 = vmatpush.bf16.msra.mxu0 %v1112
    %1248 = vmatmul.bf16.gmra.mxu0 %v343
    %v1249 = vpop.f32.mrf.mxu0
    %v1250 = vadd.f32 %v853, %v1249
    %v1251 = vpop.f32.mrf.mxu0
    %1252 = vdwg.mxu0
    %1253 = vmatpush.bf16.msra.mxu0 %v1127
    %1254 = vmatpush.bf16.msra.mxu0 %v1126
    %1255 = vmatpush.bf16.msra.mxu0 %v1125
    %1256 = vmatpush.bf16.msra.mxu0 %v1124
    %1257 = vmatpush.bf16.msra.mxu0 %v1123
    %1258 = vmatpush.bf16.msra.mxu0 %v1122
    %1259 = vmatpush.bf16.msra.mxu0 %v1121
    %1260 = vmatpush.bf16.msra.mxu0 %v1120
    %1261 = vmatmul.bf16.gmra.mxu0 %v344
    %v1262 = vpop.f32.mrf.mxu0
    %v1263 = vadd.f32 %v1250, %v1262
    %v1264 = vpop.f32.mrf.mxu0
    %1265 = vdwg.mxu0
    %1266 = vmatpush.bf16.msra.mxu0 %v1135
    %1267 = vmatpush.bf16.msra.mxu0 %v1134
    %1268 = vmatpush.bf16.msra.mxu0 %v1133
    %1269 = vmatpush.bf16.msra.mxu0 %v1132
    %1270 = vmatpush.bf16.msra.mxu0 %v1131
    %1271 = vmatpush.bf16.msra.mxu0 %v1130
    %1272 = vmatpush.bf16.msra.mxu0 %v1129
    %1273 = vmatpush.bf16.msra.mxu0 %v1128
    %1274 = vmatmul.bf16.gmra.mxu0 %v345
    %v1275 = vpop.f32.mrf.mxu0
    %v1276 = vadd.f32 %v1263, %v1275
    %v1277 = vpop.f32.mrf.mxu0
    %1278 = vdwg.mxu0
    %1279 = vmatpush.bf16.msra.mxu0 %v1143
    %1280 = vmatpush.bf16.msra.mxu0 %v1142
    %1281 = vmatpush.bf16.msra.mxu0 %v1141
    %1282 = vmatpush.bf16.msra.mxu0 %v1140
    %1283 = vmatpush.bf16.msra.mxu0 %v1139
    %1284 = vmatpush.bf16.msra.mxu0 %v1138
    %1285 = vmatpush.bf16.msra.mxu0 %v1137
    %1286 = vmatpush.bf16.msra.mxu0 %v1136
    %1287 = vmatmul.bf16.gmra.mxu0 %v346
    %v1288 = vpop.f32.mrf.mxu0
    %v1289 = vadd.f32 %v1276, %v1288
    %v1290 = vpop.f32.mrf.mxu0
    %1291 = vdwg.mxu0
    %1292 = vmatpush.bf16.msra.mxu0 %v1151
    %1293 = vmatpush.bf16.msra.mxu0 %v1150
    %1294 = vmatpush.bf16.msra.mxu0 %v1149
    %1295 = vmatpush.bf16.msra.mxu0 %v1148
    %1296 = vmatpush.bf16.msra.mxu0 %v1147
    %1297 = vmatpush.bf16.msra.mxu0 %v1146
    %1298 = vmatpush.bf16.msra.mxu0 %v1145
    %1299 = vmatpush.bf16.msra.mxu0 %v1144
    %1300 = vmatmul.bf16.gmra.mxu0 %v347
    %v1301 = vpop.f32.mrf.mxu0
    %v1302 = vadd.f32 %v1289, %v1301
    %v1303 = vpop.f32.mrf.mxu0
    %1304 = vdwg.mxu0
    %1305 = vmatpush.bf16.msra.mxu0 %v1159
    %1306 = vmatpush.bf16.msra.mxu0 %v1158
    %1307 = vmatpush.bf16.msra.mxu0 %v1157
    %1308 = vmatpush.bf16.msra.mxu0 %v1156
    %1309 = vmatpush.bf16.msra.mxu0 %v1155
    %1310 = vmatpush.bf16.msra.mxu0 %v1154
    %1311 = vmatpush.bf16.msra.mxu0 %v1153
    %1312 = vmatpush.bf16.msra.mxu0 %v1152
    %1313 = vmatmul.bf16.gmra.mxu0 %v348
    %v1314 = vpop.f32.mrf.mxu0
    %v1315 = vadd.f32 %v1302, %v1314
    %v1316 = vpop.f32.mrf.mxu0
    %1317 = vdwg.mxu0
    %1318 = vmatpush.bf16.msra.mxu0 %v1167
    %1319 = vmatpush.bf16.msra.mxu0 %v1166
    %1320 = vmatpush.bf16.msra.mxu0 %v1165
    %1321 = vmatpush.bf16.msra.mxu0 %v1164
    %1322 = vmatpush.bf16.msra.mxu0 %v1163
    %1323 = vmatpush.bf16.msra.mxu0 %v1162
    %1324 = vmatpush.bf16.msra.mxu0 %v1161
    %1325 = vmatpush.bf16.msra.mxu0 %v1160
    %1326 = vmatmul.bf16.gmra.mxu0 %v349
    %v1327 = vpop.f32.mrf.mxu0
    %v1328 = vadd.f32 %v1315, %v1327
    %v1329 = vpop.f32.mrf.mxu0
    %1330 = vdwg.mxu0
    %1331 = vmatpush.bf16.msra.mxu0 %v1175
    %1332 = vmatpush.bf16.msra.mxu0 %v1174
    %1333 = vmatpush.bf16.msra.mxu0 %v1173
    %1334 = vmatpush.bf16.msra.mxu0 %v1172
    %1335 = vmatpush.bf16.msra.mxu0 %v1171
    %1336 = vmatpush.bf16.msra.mxu0 %v1170
    %1337 = vmatpush.bf16.msra.mxu0 %v1169
    %1338 = vmatpush.bf16.msra.mxu0 %v1168
    %1339 = vmatmul.bf16.gmra.mxu0 %v350
    %v1340 = vpop.f32.mrf.mxu0
    %v1341 = vadd.f32 %v1328, %v1340
    %v1342 = vpop.f32.mrf.mxu0
    %1343 = vdwg.mxu0
    %v1344 = vadd.f32 %v367, %v1341
    %1345 = vst [vmem:[#allocation8] sm:$0xff] %v1344
    // Predicated region
    $region34: #{tpu_custom_call.1} parent=1 // pred_check
      _
    $region35: #{tpu_custom_call.1} parent=1 // pred_check_branch
      %1347 = sbr.rel (0) target = $region37
    $region36: #{tpu_custom_call.1} parent=1 // pred_region
      %1349 = vsyncadd [#allocation4], 0
      %s1351 = sshll.u32 [#allocation8], 4
      %s1352 = int_to_ptr.vmem [resolvable:$true] %s1351
      %s1353 = sshll.u32 %s4, 4
      %s1354 = int_to_ptr.hbm [resolvable:$true] %s1353
      %1356 = dma.vmem_to_hbm [thread:$0]  %s1352, 128, %s1354, [#allocation4]
    $region37: #{tpu_custom_call.1} parent=1 // pred_fallthru
      _
    // Predicated region
    $region38: #{tpu_custom_call.1} parent=1 // pred_check
      _
    $region39: #{tpu_custom_call.1} parent=1 // pred_check_branch
      %1358 = sbr.rel (0) target = $region41
    $region40: #{tpu_custom_call.1} parent=1 // pred_region
      %1360 = dma.done [#allocation4], 128
    $region41: #{tpu_custom_call.1} parent=1 // pred_fallthru
      _
    %1361 = vsyncpa [#allocation3], 1
    %1362 = vsyncpa [#allocation6], 1
    %1363 = vsyncpa [#allocation4], 1

</llo_original>
